<compile_context>
chip_gen: v7x
topology: tpu7x:2x2x1
jax: 0.10.0
libtpu: 0.0.40
codegen_flags: <defaults>
</compile_context>

<pallas_src>
import jax
import jax.numpy as jnp
from jax import lax
from jax.experimental import pallas as pl
from jax.experimental.pallas import tpu as pltpu


def _concat_const_blob_kernel(x_ref, o_ref):
    # x_ref: (C, HW)    input activations (HW == 4)
    # o_ref: (C+1, HW)  output = [sigmoid(x); const_row] along the channel axis
    c, hw = x_ref.shape

    x = x_ref[...].astype(jnp.float32)

    # EUP-native sigmoid: logistic(x) == 0.5 * (tanh(x/2) + 1).
    sig = 0.5 * (jnp.tanh(0.5 * x) + 1.0)

    # Constant blob [1,1,2,2] flattened row-major -> [0.1, -0.2, -0.3, 0.4],
    # built in-register from a 2-D lane iota (no input DMA, lowers cleanly).
    lane = lax.broadcasted_iota(jnp.int32, (1, hw), 1)
    y_row = jnp.where(
        lane == 0, 0.1,
        jnp.where(lane == 1, -0.2, jnp.where(lane == 2, -0.3, 0.4)),
    ).astype(jnp.float32)

    # Two static-slice stores (avoids an unaligned sublane concat in-kernel).
    o_ref[0:c, :] = sig.astype(o_ref.dtype)
    o_ref[c:c + 1, :] = y_row.astype(o_ref.dtype)


def concat_const_blob(x):
    """x: array of shape (1, C, 2, 2) -> (1, C+1, 2, 2) float32 (NCHW)."""
    n, c, h, w = x.shape
    assert n == 1 and h == 2 and w == 2, (
        "constant blob is [1,1,2,2]; torch.cat requires matching N,H,W")

    # NCHW -> (C, H*W) slab: channels on sublanes, flattened spatial on lanes.
    x2 = x.reshape(c, h * w)

    # TODO(synk): if C ever becomes large, switch to a lane-dense tiling with a
    # "parallel" grid axis instead of this single small (C, 4) slab.
    out2 = pl.pallas_call(
        _concat_const_blob_kernel,
        out_shape=jax.ShapeDtypeStruct((c + 1, h * w), jnp.float32),
        in_specs=[pl.BlockSpec(memory_space=pltpu.MemorySpace.VMEM)],
        out_specs=pl.BlockSpec(memory_space=pltpu.MemorySpace.VMEM),
    )(x2)

    return out2.reshape(n, c + 1, h, w)


if __name__ == "__main__":
    key = jax.random.PRNGKey(0)
    # Small shape consistent with the module: N=1, C=4, H=W=2 (NCHW).
    x = jax.random.normal(key, (1, 4, 2, 2), dtype=jnp.float32)

    out = concat_const_blob(x)
    out = jax.block_until_ready(out)

    # Sanity check against plain-JAX reference.
    y = jnp.array([[[[0.1, -0.2], [-0.3, 0.4]]]], dtype=jnp.float32)
    ref = jnp.concatenate([jax.nn.sigmoid(x), y], axis=1)
    assert out.shape == (1, 5, 2, 2), out.shape
    assert jnp.allclose(out, ref, atol=1e-6), "mismatch vs reference"

    print("KERNEL_OK")
</pallas_src>

<mosaic_0001>
module attributes {stable_mosaic.version = 11 : i64} {
  func.func @_concat_const_blob_kernel(%arg0: memref<4x4xf32, #tpu.memory_space<vmem>>, %arg1: memref<5x4xf32, #tpu.memory_space<vmem>>) attributes {dimension_semantics = [], scalar_prefetch = 0 : i64, scratch_operands = 0 : i64, tpu.core_type = #tpu.core_type<tc>} {
    %c0 = arith.constant 0 : index
    %c0_0 = arith.constant 0 : index
    %0 = vector.load %arg0[%c0, %c0_0] : memref<4x4xf32, #tpu.memory_space<vmem>>, vector<4x4xf32>
    %cst = arith.constant 5.000000e-01 : f32
    %1 = vector.broadcast %cst : f32 to vector<4x4xf32>
    %2 = arith.mulf %1, %0 : vector<4x4xf32>
    %3 = math.tanh %2 : vector<4x4xf32>
    %cst_1 = arith.constant 1.000000e+00 : f32
    %4 = vector.broadcast %cst_1 : f32 to vector<4x4xf32>
    %5 = arith.addf %3, %4 : vector<4x4xf32>
    %cst_2 = arith.constant 5.000000e-01 : f32
    %6 = vector.broadcast %cst_2 : f32 to vector<4x4xf32>
    %7 = arith.mulf %6, %5 : vector<4x4xf32>
    %8 = tpu.iota {dimensions = array<i32: 1>} : vector<1x4xi32>
    %c0_i32 = arith.constant 0 : i32
    %9 = vector.broadcast %c0_i32 : i32 to vector<1x4xi32>
    %10 = arith.cmpi eq, %8, %9 : vector<1x4xi32>
    %c1_i32 = arith.constant 1 : i32
    %11 = vector.broadcast %c1_i32 : i32 to vector<1x4xi32>
    %12 = arith.cmpi eq, %8, %11 : vector<1x4xi32>
    %c2_i32 = arith.constant 2 : i32
    %13 = vector.broadcast %c2_i32 : i32 to vector<1x4xi32>
    %14 = arith.cmpi eq, %8, %13 : vector<1x4xi32>
    %cst_3 = arith.constant -3.000000e-01 : f32
    %cst_4 = arith.constant 4.000000e-01 : f32
    %15 = vector.broadcast %cst_3 : f32 to vector<1x4xf32>
    %16 = vector.broadcast %cst_4 : f32 to vector<1x4xf32>
    %17 = arith.select %14, %15, %16 : vector<1x4xi1>, vector<1x4xf32>
    %cst_5 = arith.constant -2.000000e-01 : f32
    %18 = vector.broadcast %cst_5 : f32 to vector<1x4xf32>
    %19 = arith.select %12, %18, %17 : vector<1x4xi1>, vector<1x4xf32>
    %cst_6 = arith.constant 1.000000e-01 : f32
    %20 = vector.broadcast %cst_6 : f32 to vector<1x4xf32>
    %21 = arith.select %10, %20, %19 : vector<1x4xi1>, vector<1x4xf32>
    %c0_7 = arith.constant 0 : index
    %c0_8 = arith.constant 0 : index
    %22 = vector.load %arg1[%c0_7, %c0_8] : memref<5x4xf32, #tpu.memory_space<vmem>>, vector<4x4xf32>
    tpu.vector_store %arg1[%c0_7, %c0_8], %7 {strides = array<i32>} : memref<5x4xf32, #tpu.memory_space<vmem>>, vector<4x4xf32>,
    %c4 = arith.constant 4 : index
    %c0_9 = arith.constant 0 : index
    %23 = vector.load %arg1[%c4, %c0_9] : memref<5x4xf32, #tpu.memory_space<vmem>>, vector<1x4xf32>
    tpu.vector_store %arg1[%c4, %c0_9], %21 {strides = array<i32>} : memref<5x4xf32, #tpu.memory_space<vmem>>, vector<1x4xf32>,
    return
  }
}

</mosaic_0001>

<llo_original>
// kernel: tpu_custom_call.1
$region0: #{tpu_custom_call.1}
  #allocation0 [shape = 'u32[]', space=smem, size = 0x4, offset = 0x4, fixed_abs, tag = 'smem constant byte address 0x4 - core index']
  #allocation1 [shape = 'u32[144,128]{1,0:T(1,128)}', space=vmem, size = 0x12000, scoped, tag = 'internal scratch']
  %s0 = inlined_call_operand.hbm [shape: f32[4,4], index: 0, kind: input, shape index: {}]
  %s1 = inlined_call_operand.vmem [shape: f32[5,4], index: 1, kind: output, shape index: {}]
  %s2 = sld [smem:[#allocation0]]
  $region18: #{tpu_custom_call.1} parent=0
    _
  %s4 = ssub.s32 1, %s2
  %s5 = scalar_select 0, %s4, %s2
  $region1: #{tpu_custom_call.1} parent=0
    #allocation2 [shape = 'u8[2048]{0}', space=vmem, size = 0x800, scoped, tag = 'input window, operand 0, single buffered']
    #allocation3 [shape = 's32[1]{0}', space=sflag, size = 0x4, scoped, tag = 'scoped memory for tpu_custom_call.1']
    %6 = vsyncpa [#allocation3], 0
    // Predicated region
    $region2: #{tpu_custom_call.1} parent=1 // pred_check
      _
    $region3: #{tpu_custom_call.1} parent=1 // pred_check_branch
      %8 = sbr.rel (0) target = $region5
    $region4: #{tpu_custom_call.1} parent=1 // pred_region
      %s10 = ssub.s32 64, 64
      %11 = vsyncadd [#allocation3], %s10
      %s13 = sshll.u32 [#allocation2], 4
      %s14 = int_to_ptr.vmem [resolvable:$true] %s13
      %16 = dma.hbm_to_vmem [thread:$0]  %s0, 64, %s14, [#allocation3]
    $region5: #{tpu_custom_call.1} parent=1 // pred_fallthru
      _
    // Predicated region
    $region6: #{tpu_custom_call.1} parent=1 // pred_check
      _
    $region7: #{tpu_custom_call.1} parent=1 // pred_check_branch
      %18 = sbr.rel (0) target = $region9
    $region8: #{tpu_custom_call.1} parent=1 // pred_region
      %19 = dma.done [#allocation3], 64
    $region9: #{tpu_custom_call.1} parent=1 // pred_fallthru
      _
    %v20 = vld [vmem:[#allocation2] sm:$0xf]
    %v21 = vmul.f32 %v20, 0.5
    %v22 = vtanh.pop %v21
    %v23 = vadd.f32 %v22, 1.0
    %v24 = vmul.f32 %v23, 0.5
    %v25 = vlaneseq
    %v26 = vand.u32 %v25, 127
    %vm27 = vcmp.eq.s32.totalorder %v26, 0
    %vm28 = vcmp.eq.s32.totalorder %v26, 1
    %vm29 = vcmp.eq.s32.totalorder %v26, 2
    %v30 = vsel %vm29, -0.3, 0.4
    %v31 = vsel %vm28, -0.2, %v30
    %v32 = vsel %vm27, 0.1, %v31
    %vm33 = vcmask 27648
    %34 = vst.msk [vmem:[%s1] sm:$0xf] %vm33, %v24
    %vm35 = vcmask 24576
    %36 = vst.msk [vmem:[%s1 + $0x4] sm:$0x1] %vm35, %v32
    // Predicated region
    $region10: #{tpu_custom_call.1} parent=1 // pred_check
      _
    $region11: #{tpu_custom_call.1} parent=1 // pred_check_branch
      %38 = sbr.rel (0) target = $region13
    $region12: #{tpu_custom_call.1} parent=1 // pred_region
      _
    $region13: #{tpu_custom_call.1} parent=1 // pred_fallthru
      _
    // Predicated region
    $region14: #{tpu_custom_call.1} parent=1 // pred_check
      _
    $region15: #{tpu_custom_call.1} parent=1 // pred_check_branch
      %40 = sbr.rel (0) target = $region17
    $region16: #{tpu_custom_call.1} parent=1 // pred_region
      _
    $region17: #{tpu_custom_call.1} parent=1 // pred_fallthru
      _
    %41 = vsyncpa [#allocation3], 1

</llo_original>
